<compile_context>
chip_gen: v5e
topology: v5e:2x2
jax: 0.10.0
libtpu: 0.0.40
codegen_flags: <defaults>
</compile_context>

<pallas_src>
import jax
import jax.numpy as jnp
from jax.experimental import pallas as pl
from jax.experimental.pallas import tpu as pltpu

LANE = 128          # TPU lane width: pad hidden/output feature dims to this
SUBLANE = 8         # f32 sublane count: pad batch tiles to a multiple of this
DEFAULT_TB = 512    # batch tile (rows); sized well under v7x's 64 MiB VMEM


def _round_up(n, m):
    return pl.cdiv(n, m) * m


def _meta_policy_kernel(x_ref, w1_ref, b1_ref, w2_ref, b2_ref, w3_ref, b3_ref, o_ref):
    # One (TB, state_dim) batch tile per grid step; weights are whole-array
    # blocks that the pipeline keeps resident in VMEM.
    x = x_ref[...]

    # fc1 + ReLU (MXU matmul, f32 accumulation; bias/ReLU on VPU in f32)
    h1 = jnp.dot(x, w1_ref[...], preferred_element_type=jnp.float32) + b1_ref[...]
    h1 = jnp.maximum(h1, 0.0)

    # fc2 + ReLU
    h2 = jnp.dot(h1, w2_ref[...], preferred_element_type=jnp.float32) + b2_ref[...]
    h2 = jnp.maximum(h2, 0.0)

    # fc3 (no activation) -> lane-dense (TB, 128) store
    out = jnp.dot(h2, w3_ref[...], preferred_element_type=jnp.float32) + b3_ref[...]
    o_ref[...] = out.astype(o_ref.dtype)


def meta_policy_forward(x, params, *, block_b=DEFAULT_TB):
    """x: (B, state_dim) float32. params: dict of w1,b1,w2,b2,w3,b3 (unpadded,
    weights stored as (in_features, out_features), biases as (1, out_features))."""
    w1, b1 = params["w1"], params["b1"]
    w2, b2 = params["w2"], params["b2"]
    w3, b3 = params["w3"], params["b3"]

    B, S = x.shape
    H = w1.shape[1]
    A = w3.shape[1]
    H_pad = _round_up(H, LANE)
    A_pad = _round_up(A, LANE)

    # Zero-pad hidden/output feature dims to 128 lanes. Padded columns/rows are
    # exactly zero, so ReLU(0 + 0) = 0 contributes nothing and the math is
    # unchanged.  (In production, pre-pad the stored weights once instead of
    # per call; under jit these pads constant-fold anyway.)
    w1p = jnp.pad(w1, ((0, 0), (0, H_pad - H)))
    b1p = jnp.pad(b1, ((0, 0), (0, H_pad - H)))
    w2p = jnp.pad(w2, ((0, H_pad - H), (0, H_pad - H)))
    b2p = jnp.pad(b2, ((0, 0), (0, H_pad - H)))
    w3p = jnp.pad(w3, ((0, H_pad - H), (0, A_pad - A)))
    b3p = jnp.pad(b3, ((0, 0), (0, A_pad - A)))

    # Batch tile: multiple of 8 sublanes, capped at block_b rows.
    TB = min(block_b, _round_up(B, SUBLANE))
    B_pad = _round_up(B, TB)
    xp = jnp.pad(x, ((0, B_pad - B), (0, 0))) if B_pad != B else x

    grid = (B_pad // TB,)

    # Weights/biases: whole-array blocks with constant index maps -> DMA'd once
    # and kept resident in VMEM across grid steps.
    const2d = lambda a: pl.BlockSpec(a.shape, lambda i: (0, 0))

    out_padded = pl.pallas_call(
        _meta_policy_kernel,
        out_shape=jax.ShapeDtypeStruct((B_pad, A_pad), jnp.float32),
        grid=grid,
        in_specs=[
            pl.BlockSpec((TB, S), lambda i: (i, 0)),   # streamed batch tile
            const2d(w1p), const2d(b1p),
            const2d(w2p), const2d(b2p),
            const2d(w3p), const2d(b3p),
        ],
        out_specs=pl.BlockSpec((TB, A_pad), lambda i: (i, 0)),
        compiler_params=pltpu.CompilerParams(
            dimension_semantics=("parallel",),   # shard batch tiles across TCs on v7x
        ),
    )(xp, w1p, b1p, w2p, b2p, w3p, b3p)

    # Slice off batch padding and the zero-padded output lanes.
    return out_padded[:B, :A]


def init_params(key, state_dim, action_dim, hidden_size=32):
    """Deterministic init mimicking nn.Linear default (uniform +/- 1/sqrt(fan_in))."""
    ks = jax.random.split(key, 6)

    def linear(kw, kb, fan_in, fan_out):
        bound = 1.0 / jnp.sqrt(fan_in)
        w = jax.random.uniform(kw, (fan_in, fan_out), jnp.float32, -bound, bound)
        b = jax.random.uniform(kb, (1, fan_out), jnp.float32, -bound, bound)
        return w, b

    w1, b1 = linear(ks[0], ks[1], state_dim, hidden_size)
    w2, b2 = linear(ks[2], ks[3], hidden_size, hidden_size)
    w3, b3 = linear(ks[4], ks[5], hidden_size, action_dim)
    return {"w1": w1, "b1": b1, "w2": w2, "b2": b2, "w3": w3, "b3": b3}


def _ref_forward(x, p):
    h = jnp.maximum(x @ p["w1"] + p["b1"], 0.0)
    h = jnp.maximum(h @ p["w2"] + p["b2"], 0.0)
    return h @ p["w3"] + p["b3"]


if __name__ == "__main__":
    # VehicularHoneypotEnv-style dims: prev_action one-hot (4) + security_risk (1)
    # + residual_resource (1) -> state_dim = 6, action_dim = 4.
    state_dim = 6
    action_dim = 4
    hidden_size = 32

    key = jax.random.PRNGKey(0)
    k_params, k_x1, k_x2 = jax.random.split(key, 3)
    params = init_params(k_params, state_dim, action_dim, hidden_size)

    # Small batch (spec-scale): exercises sublane padding (B=2 -> 8).
    x_small = jax.random.normal(k_x1, (2, state_dim), jnp.float32)
    out_small = jax.block_until_ready(meta_policy_forward(x_small, params))
    assert out_small.shape == (2, action_dim)
    assert jnp.allclose(out_small, _ref_forward(x_small, params), atol=1e-4, rtol=1e-4)

    # Ragged larger batch: exercises the multi-step batch grid + padding path.
    x_big = jax.random.normal(k_x2, (1037, state_dim), jnp.float32)
    out_big = jax.block_until_ready(meta_policy_forward(x_big, params))
    assert out_big.shape == (1037, action_dim)
    assert jnp.allclose(out_big, _ref_forward(x_big, params), atol=1e-4, rtol=1e-4)

    print("KERNEL_OK")
</pallas_src>

<mosaic_0001>
module attributes {stable_mosaic.version = 11 : i64} {
  func.func @_meta_policy_kernel(%arg0: i32, %arg1: memref<8x6xf32, #tpu.memory_space<vmem>>, %arg2: memref<6x128xf32, #tpu.memory_space<vmem>>, %arg3: memref<1x128xf32, #tpu.memory_space<vmem>>, %arg4: memref<128x128xf32, #tpu.memory_space<vmem>>, %arg5: memref<1x128xf32, #tpu.memory_space<vmem>>, %arg6: memref<128x128xf32, #tpu.memory_space<vmem>>, %arg7: memref<1x128xf32, #tpu.memory_space<vmem>>, %arg8: memref<8x128xf32, #tpu.memory_space<vmem>>) attributes {dimension_semantics = [#tpu.dimension_semantics<parallel>], iteration_bounds = array<i64: 1>, scalar_prefetch = 0 : i64, scratch_operands = 0 : i64, tpu.core_type = #tpu.core_type<tc>, window_params = [{transform_indices = @transform_0, window_bounds = array<i64: 8, 6>}, {pipeline_mode = #tpu.pipeline_mode<synchronous>, transform_indices = @transform_1, window_bounds = array<i64: 6, 128>}, {pipeline_mode = #tpu.pipeline_mode<synchronous>, transform_indices = @transform_2, window_bounds = array<i64: 1, 128>}, {pipeline_mode = #tpu.pipeline_mode<synchronous>, transform_indices = @transform_3, window_bounds = array<i64: 128, 128>}, {pipeline_mode = #tpu.pipeline_mode<synchronous>, transform_indices = @transform_4, window_bounds = array<i64: 1, 128>}, {pipeline_mode = #tpu.pipeline_mode<synchronous>, transform_indices = @transform_5, window_bounds = array<i64: 128, 128>}, {pipeline_mode = #tpu.pipeline_mode<synchronous>, transform_indices = @transform_6, window_bounds = array<i64: 1, 128>}, {transform_indices = @transform_7, window_bounds = array<i64: 8, 128>}]} {
    %c0 = arith.constant 0 : index
    %c0_0 = arith.constant 0 : index
    %0 = vector.load %arg1[%c0, %c0_0] : memref<8x6xf32, #tpu.memory_space<vmem>>, vector<8x6xf32>
    %c0_1 = arith.constant 0 : index
    %c0_2 = arith.constant 0 : index
    %1 = vector.load %arg2[%c0_1, %c0_2] : memref<6x128xf32, #tpu.memory_space<vmem>>, vector<6x128xf32>
    %cst = arith.constant dense<0.000000e+00> : vector<8x128xf32>
    %2 = tpu.matmul %0, %1, %cst {dimension_numbers = #tpu.dot_dimension_numbers<[1], [0], [0], [1], [0, 0, 1, 1], [], []>} : vector<8x6xf32>, vector<6x128xf32>, vector<8x128xf32> -> vector<8x128xf32>
    %c0_3 = arith.constant 0 : index
    %c0_4 = arith.constant 0 : index
    %3 = vector.load %arg3[%c0_3, %c0_4] : memref<1x128xf32, #tpu.memory_space<vmem>>, vector<1x128xf32>
    %4 = vector.broadcast %3 : vector<1x128xf32> to vector<8x128xf32>
    %5 = arith.addf %2, %4 : vector<8x128xf32>
    %cst_5 = arith.constant 0.000000e+00 : f32
    %6 = vector.broadcast %cst_5 : f32 to vector<8x128xf32>
    %7 = arith.maximumf %5, %6 : vector<8x128xf32>
    %c0_6 = arith.constant 0 : index
    %c0_7 = arith.constant 0 : index
    %8 = vector.load %arg4[%c0_6, %c0_7] : memref<128x128xf32, #tpu.memory_space<vmem>>, vector<128x128xf32>
    %cst_8 = arith.constant dense<0.000000e+00> : vector<8x128xf32>
    %9 = tpu.matmul %7, %8, %cst_8 {dimension_numbers = #tpu.dot_dimension_numbers<[1], [0], [0], [1], [0, 0, 1, 1], [], []>} : vector<8x128xf32>, vector<128x128xf32>, vector<8x128xf32> -> vector<8x128xf32>
    %c0_9 = arith.constant 0 : index
    %c0_10 = arith.constant 0 : index
    %10 = vector.load %arg5[%c0_9, %c0_10] : memref<1x128xf32, #tpu.memory_space<vmem>>, vector<1x128xf32>
    %11 = vector.broadcast %10 : vector<1x128xf32> to vector<8x128xf32>
    %12 = arith.addf %9, %11 : vector<8x128xf32>
    %cst_11 = arith.constant 0.000000e+00 : f32
    %13 = vector.broadcast %cst_11 : f32 to vector<8x128xf32>
    %14 = arith.maximumf %12, %13 : vector<8x128xf32>
    %c0_12 = arith.constant 0 : index
    %c0_13 = arith.constant 0 : index
    %15 = vector.load %arg6[%c0_12, %c0_13] : memref<128x128xf32, #tpu.memory_space<vmem>>, vector<128x128xf32>
    %cst_14 = arith.constant dense<0.000000e+00> : vector<8x128xf32>
    %16 = tpu.matmul %14, %15, %cst_14 {dimension_numbers = #tpu.dot_dimension_numbers<[1], [0], [0], [1], [0, 0, 1, 1], [], []>} : vector<8x128xf32>, vector<128x128xf32>, vector<8x128xf32> -> vector<8x128xf32>
    %c0_15 = arith.constant 0 : index
    %c0_16 = arith.constant 0 : index
    %17 = vector.load %arg7[%c0_15, %c0_16] : memref<1x128xf32, #tpu.memory_space<vmem>>, vector<1x128xf32>
    %18 = vector.broadcast %17 : vector<1x128xf32> to vector<8x128xf32>
    %19 = arith.addf %16, %18 : vector<8x128xf32>
    %c0_17 = arith.constant 0 : index
    %c0_18 = arith.constant 0 : index
    %20 = vector.load %arg8[%c0_17, %c0_18] : memref<8x128xf32, #tpu.memory_space<vmem>>, vector<8x128xf32>
    tpu.vector_store %arg8[%c0_17, %c0_18], %19 {strides = array<i32>} : memref<8x128xf32, #tpu.memory_space<vmem>>, vector<8x128xf32>,
    return
  }
  func.func @transform_0(%arg0: i32) -> (i32, i32) {
    %c0_i32 = arith.constant 0 : i32
    %c0_i32_0 = arith.constant 0 : i32
    return %arg0, %c0_i32 : i32, i32
  }
  func.func @transform_1(%arg0: i32) -> (i32, i32) {
    %c0_i32 = arith.constant 0 : i32
    %c0_i32_0 = arith.constant 0 : i32
    %c0_i32_1 = arith.constant 0 : i32
    return %c0_i32, %c0_i32_0 : i32, i32
  }
  func.func @transform_2(%arg0: i32) -> (i32, i32) {
    %c0_i32 = arith.constant 0 : i32
    %c0_i32_0 = arith.constant 0 : i32
    %c0_i32_1 = arith.constant 0 : i32
    return %c0_i32, %c0_i32_0 : i32, i32
  }
  func.func @transform_3(%arg0: i32) -> (i32, i32) {
    %c0_i32 = arith.constant 0 : i32
    %c0_i32_0 = arith.constant 0 : i32
    %c0_i32_1 = arith.constant 0 : i32
    return %c0_i32, %c0_i32_0 : i32, i32
  }
  func.func @transform_4(%arg0: i32) -> (i32, i32) {
    %c0_i32 = arith.constant 0 : i32
    %c0_i32_0 = arith.constant 0 : i32
    %c0_i32_1 = arith.constant 0 : i32
    return %c0_i32, %c0_i32_0 : i32, i32
  }
  func.func @transform_5(%arg0: i32) -> (i32, i32) {
    %c0_i32 = arith.constant 0 : i32
    %c0_i32_0 = arith.constant 0 : i32
    %c0_i32_1 = arith.constant 0 : i32
    return %c0_i32, %c0_i32_0 : i32, i32
  }
  func.func @transform_6(%arg0: i32) -> (i32, i32) {
    %c0_i32 = arith.constant 0 : i32
    %c0_i32_0 = arith.constant 0 : i32
    %c0_i32_1 = arith.constant 0 : i32
    return %c0_i32, %c0_i32_0 : i32, i32
  }
  func.func @transform_7(%arg0: i32) -> (i32, i32) {
    %c0_i32 = arith.constant 0 : i32
    %c0_i32_0 = arith.constant 0 : i32
    return %arg0, %c0_i32 : i32, i32
  }
}

</mosaic_0001>

<llo_original>
// kernel: tpu_custom_call.1
$region0: #{tpu_custom_call.1}
  #allocation0 [shape = 'u32[]', space=smem, size = 0x4, offset = 0x4, fixed_abs, tag = 'smem constant byte address 0x4 - core index']
  #allocation1 [shape = 'u32[72,128]{1,0:T(1,128)}', space=vmem, size = 0x9000, scoped, tag = 'internal scratch']
  %s0 = inlined_call_operand.hbm [shape: f32[8,6], index: 0, kind: input, shape index: {}]
  %s1 = inlined_call_operand.hbm [shape: f32[6,128], index: 1, kind: input, shape index: {}]
  %s2 = inlined_call_operand.vmem [shape: f32[1,128], index: 2, kind: input, shape index: {}]
  %s3 = inlined_call_operand.hbm [shape: f32[128,128], index: 3, kind: input, shape index: {}]
  %s4 = inlined_call_operand.vmem [shape: f32[1,128], index: 4, kind: input, shape index: {}]
  %s5 = inlined_call_operand.hbm [shape: f32[128,128], index: 5, kind: input, shape index: {}]
  %s6 = inlined_call_operand.vmem [shape: f32[1,128], index: 6, kind: input, shape index: {}]
  %s7 = inlined_call_operand.hbm [shape: f32[8,128], index: 7, kind: output, shape index: {}]
  %s8 = sld [smem:[#allocation0]]
  $region54: #{tpu_custom_call.1} parent=0
    _
  %s10 = ssub.s32 1, %s8
  %s11 = scalar_select 0, %s10, %s8
  $region1: #{tpu_custom_call.1} parent=0
    #allocation2 [shape = 'u8[4096]{0}', space=vmem, size = 0x1000, scoped, tag = 'input window, operand 0, single buffered']
    #allocation3 [shape = 's32[1]{0}', space=sflag, size = 0x4, scoped, tag = 'scoped memory for tpu_custom_call.1']
    #allocation4 [shape = 's32[1]{0}', space=sflag, size = 0x4, scoped, tag = 'scoped memory for tpu_custom_call.1']
    #allocation5 [shape = 'u8[4096]{0}', space=vmem, size = 0x1000, scoped, tag = 'input window, operand 1, single buffered']
    #allocation6 [shape = 's32[1]{0}', space=sflag, size = 0x4, scoped, tag = 'scoped memory for tpu_custom_call.1']
    #allocation7 [shape = 'u8[65536]{0}', space=vmem, size = 0x10000, scoped, tag = 'input window, operand 3, single buffered']
    #allocation8 [shape = 'u8[65536]{0}', space=vmem, size = 0x10000, scoped, tag = 'input window, operand 5, single buffered']
    #allocation9 [shape = 's32[1]{0}', space=sflag, size = 0x4, scoped, tag = 'scoped memory for tpu_custom_call.1']
    #allocation10 [shape = 'u8[4096]{0}', space=vmem, size = 0x1000, scoped, tag = 'output window, operand 0, single buffered']
    %12 = vsyncpa [#allocation3], 0
    %13 = vsyncpa [#allocation6], 0
    %14 = vsyncpa [#allocation9], 0
    %15 = vsyncpa [#allocation4], 0
    // Predicated region
    $region2: #{tpu_custom_call.1} parent=1 // pred_check
      _
    $region3: #{tpu_custom_call.1} parent=1 // pred_check_branch
      %17 = sbr.rel (0) target = $region5
    $region4: #{tpu_custom_call.1} parent=1 // pred_region
      %19 = vsyncadd [#allocation3], 0
      %s21 = sshll.u32 %s0, 4
      %s22 = int_to_ptr.hbm [resolvable:$true] %s21
      %s23 = sshll.u32 [#allocation2], 4
      %s24 = int_to_ptr.vmem [resolvable:$true] %s23
      %26 = dma.hbm_to_vmem [thread:$0]  %s22, 128, %s24, [#allocation3]
    $region5: #{tpu_custom_call.1} parent=1 // pred_fallthru
      _
    // Predicated region
    $region6: #{tpu_custom_call.1} parent=1 // pred_check
      _
    $region7: #{tpu_custom_call.1} parent=1 // pred_check_branch
      %28 = sbr.rel (0) target = $region9
    $region8: #{tpu_custom_call.1} parent=1 // pred_region
      %30 = vsyncadd [#allocation6], 0
      %s32 = sshll.u32 %s1, 4
      %s33 = int_to_ptr.hbm [resolvable:$true] %s32
      %s34 = sshll.u32 [#allocation5], 4
      %s35 = int_to_ptr.vmem [resolvable:$true] %s34
      %37 = dma.hbm_to_vmem [thread:$0]  %s33, 128, %s35, [#allocation6]
    $region9: #{tpu_custom_call.1} parent=1 // pred_fallthru
      _
    // Predicated region
    $region10: #{tpu_custom_call.1} parent=1 // pred_check
      _
    $region11: #{tpu_custom_call.1} parent=1 // pred_check_branch
      %39 = sbr.rel (0) target = $region13
    $region12: #{tpu_custom_call.1} parent=1 // pred_region
      _
    $region13: #{tpu_custom_call.1} parent=1 // pred_fallthru
      _
    // Predicated region
    $region14: #{tpu_custom_call.1} parent=1 // pred_check
      _
    $region15: #{tpu_custom_call.1} parent=1 // pred_check_branch
      %41 = sbr.rel (0) target = $region17
    $region16: #{tpu_custom_call.1} parent=1 // pred_region
      %43 = vsyncadd [#allocation6], 0
      %s44 = sshll.u32 %s3, 4
      %s45 = int_to_ptr.hbm [resolvable:$true] %s44
      %s46 = sshll.u32 [#allocation7], 4
      %s47 = int_to_ptr.vmem [resolvable:$true] %s46
      %52 = dma.hbm_to_vmem [thread:$0]  %s45, 2048, %s47, [#allocation6], 128, 128, 8
    $region17: #{tpu_custom_call.1} parent=1 // pred_fallthru
      _
    // Predicated region
    $region18: #{tpu_custom_call.1} parent=1 // pred_check
      _
    $region19: #{tpu_custom_call.1} parent=1 // pred_check_branch
      %54 = sbr.rel (0) target = $region21
    $region20: #{tpu_custom_call.1} parent=1 // pred_region
      _
    $region21: #{tpu_custom_call.1} parent=1 // pred_fallthru
      _
    // Predicated region
    $region22: #{tpu_custom_call.1} parent=1 // pred_check
      _
    $region23: #{tpu_custom_call.1} parent=1 // pred_check_branch
      %56 = sbr.rel (0) target = $region25
    $region24: #{tpu_custom_call.1} parent=1 // pred_region
      %58 = vsyncadd [#allocation9], 0
      %s59 = sshll.u32 %s5, 4
      %s60 = int_to_ptr.hbm [resolvable:$true] %s59
      %s61 = sshll.u32 [#allocation8], 4
      %s62 = int_to_ptr.vmem [resolvable:$true] %s61
      %67 = dma.hbm_to_vmem [thread:$0]  %s60, 2048, %s62, [#allocation9], 128, 128, 8
    $region25: #{tpu_custom_call.1} parent=1 // pred_fallthru
      _
    // Predicated region
    $region26: #{tpu_custom_call.1} parent=1 // pred_check
      _
    $region27: #{tpu_custom_call.1} parent=1 // pred_check_branch
      %69 = sbr.rel (0) target = $region29
    $region28: #{tpu_custom_call.1} parent=1 // pred_region
      _
    $region29: #{tpu_custom_call.1} parent=1 // pred_fallthru
      _
    // Predicated region
    $region30: #{tpu_custom_call.1} parent=1 // pred_check
      _
    $region31: #{tpu_custom_call.1} parent=1 // pred_check_branch
      %71 = sbr.rel (0) target = $region33
    $region32: #{tpu_custom_call.1} parent=1 // pred_region
      %73 = dma.done [#allocation3], 128
    $region33: #{tpu_custom_call.1} parent=1 // pred_fallthru
      _
    // Predicated region
    $region34: #{tpu_custom_call.1} parent=1 // pred_check
      _
    $region35: #{tpu_custom_call.1} parent=1 // pred_check_branch
      %75 = sbr.rel (0) target = $region37
    $region36: #{tpu_custom_call.1} parent=1 // pred_region
      %77 = dma.done [#allocation6], 128
    $region37: #{tpu_custom_call.1} parent=1 // pred_fallthru
      _
    // Predicated region
    $region38: #{tpu_custom_call.1} parent=1 // pred_check
      _
    $region39: #{tpu_custom_call.1} parent=1 // pred_check_branch
      %79 = sbr.rel (0) target = $region41
    $region40: #{tpu_custom_call.1} parent=1 // pred_region
      %81 = dma.done [#allocation6], 2048
    $region41: #{tpu_custom_call.1} parent=1 // pred_fallthru
      _
    // Predicated region
    $region42: #{tpu_custom_call.1} parent=1 // pred_check
      _
    $region43: #{tpu_custom_call.1} parent=1 // pred_check_branch
      %83 = sbr.rel (0) target = $region45
    $region44: #{tpu_custom_call.1} parent=1 // pred_region
      %85 = dma.done [#allocation9], 2048
    $region45: #{tpu_custom_call.1} parent=1 // pred_fallthru
      _
    %v86 = vld [vmem:[#allocation2] sm:$0xff]
    %v87 = vld [vmem:[#allocation5] sm:$0x3f]
    %v88 = vld [vmem:[%s2] sm:$0x1]
    %v90 = vperm.slane %v88, 0
    %vm92 = vcmask 48128
    %v94 = vsel %vm92, %v86, 0
    %vm96 = vcmask 1045504
    %v98 = vsel %vm96, %v87, 0
    %100 = vmatpush.msra.mxu0 0.0
    %101 = vmatpush.msra.mxu0 0.0
    %102 = vmatpush.msra.mxu0 0.0
    %103 = vmatpush.msra.mxu0 0.0
    %104 = vmatpush.msra.mxu0 0.0
    %105 = vmatpush.msra.mxu0 0.0
    %106 = vmatpush.msra.mxu0 0.0
    %107 = vmatpush.msra.mxu0 0.0
    %108 = vmatpush.msra.mxu0 0.0
    %109 = vmatpush.msra.mxu0 0.0
    %110 = vmatpush.msra.mxu0 0.0
    %111 = vmatpush.msra.mxu0 0.0
    %112 = vmatpush.msra.mxu0 0.0
    %113 = vmatpush.msra.mxu0 0.0
    %114 = vmatpush.msra.mxu0 0.0
    %115 = vmatpush.msra.mxu0 %v98
    %116 = vmatmul.f32.gmra.mxu0 %v94
    %v117 = vpop.f32.mrf.mxu0
    %v118 = vadd.f32 %v90, %v117
    %119 = vdwg.mxu0
    %v120 = vmax.f32 %v118, 0.0
    %v121 = vld [vmem:[#allocation7] sm:$0xff]
    %v122 = vld [vmem:[#allocation7 + $0x8] sm:$0xff]
    %v123 = vld [vmem:[#allocation7 + $0x10] sm:$0xff]
    %v124 = vld [vmem:[#allocation7 + $0x18] sm:$0xff]
    %v125 = vld [vmem:[#allocation7 + $0x20] sm:$0xff]
    %v126 = vld [vmem:[#allocation7 + $0x28] sm:$0xff]
    %v127 = vld [vmem:[#allocation7 + $0x30] sm:$0xff]
    %v128 = vld [vmem:[#allocation7 + $0x38] sm:$0xff]
    %v129 = vld [vmem:[#allocation7 + $0x40] sm:$0xff]
    %v130 = vld [vmem:[#allocation7 + $0x48] sm:$0xff]
    %v131 = vld [vmem:[#allocation7 + $0x50] sm:$0xff]
    %v132 = vld [vmem:[#allocation7 + $0x58] sm:$0xff]
    %v133 = vld [vmem:[#allocation7 + $0x60] sm:$0xff]
    %v134 = vld [vmem:[#allocation7 + $0x68] sm:$0xff]
    %v135 = vld [vmem:[#allocation7 + $0x70] sm:$0xff]
    %v136 = vld [vmem:[#allocation7 + $0x78] sm:$0xff]
    %v137 = vld [vmem:[%s4] sm:$0x1]
    %v139 = vperm.slane %v137, 0
    %141 = vmatpush.msra.mxu0 %v136
    %142 = vmatpush.msra.mxu0 %v135
    %143 = vmatpush.msra.mxu0 %v134
    %144 = vmatpush.msra.mxu0 %v133
    %145 = vmatpush.msra.mxu0 %v132
    %146 = vmatpush.msra.mxu0 %v131
    %147 = vmatpush.msra.mxu0 %v130
    %148 = vmatpush.msra.mxu0 %v129
    %149 = vmatpush.msra.mxu0 %v128
    %150 = vmatpush.msra.mxu0 %v127
    %151 = vmatpush.msra.mxu0 %v126
    %152 = vmatpush.msra.mxu0 %v125
    %153 = vmatpush.msra.mxu0 %v124
    %154 = vmatpush.msra.mxu0 %v123
    %155 = vmatpush.msra.mxu0 %v122
    %156 = vmatpush.msra.mxu0 %v121
    %157 = vmatmul.f32.gmra.mxu0 %v120
    %v158 = vpop.f32.mrf.mxu0
    %v159 = vadd.f32 %v139, %v158
    %160 = vdwg.mxu0
    %v161 = vmax.f32 %v159, 0.0
    %v162 = vld [vmem:[#allocation8] sm:$0xff]
    %v163 = vld [vmem:[#allocation8 + $0x8] sm:$0xff]
    %v164 = vld [vmem:[#allocation8 + $0x10] sm:$0xff]
    %v165 = vld [vmem:[#allocation8 + $0x18] sm:$0xff]
    %v166 = vld [vmem:[#allocation8 + $0x20] sm:$0xff]
    %v167 = vld [vmem:[#allocation8 + $0x28] sm:$0xff]
    %v168 = vld [vmem:[#allocation8 + $0x30] sm:$0xff]
    %v169 = vld [vmem:[#allocation8 + $0x38] sm:$0xff]
    %v170 = vld [vmem:[#allocation8 + $0x40] sm:$0xff]
    %v171 = vld [vmem:[#allocation8 + $0x48] sm:$0xff]
    %v172 = vld [vmem:[#allocation8 + $0x50] sm:$0xff]
    %v173 = vld [vmem:[#allocation8 + $0x58] sm:$0xff]
    %v174 = vld [vmem:[#allocation8 + $0x60] sm:$0xff]
    %v175 = vld [vmem:[#allocation8 + $0x68] sm:$0xff]
    %v176 = vld [vmem:[#allocation8 + $0x70] sm:$0xff]
    %v177 = vld [vmem:[#allocation8 + $0x78] sm:$0xff]
    %v178 = vld [vmem:[%s6] sm:$0x1]
    %v180 = vperm.slane %v178, 0
    %182 = vmatpush.msra.mxu0 %v177
    %183 = vmatpush.msra.mxu0 %v176
    %184 = vmatpush.msra.mxu0 %v175
    %185 = vmatpush.msra.mxu0 %v174
    %186 = vmatpush.msra.mxu0 %v173
    %187 = vmatpush.msra.mxu0 %v172
    %188 = vmatpush.msra.mxu0 %v171
    %189 = vmatpush.msra.mxu0 %v170
    %190 = vmatpush.msra.mxu0 %v169
    %191 = vmatpush.msra.mxu0 %v168
    %192 = vmatpush.msra.mxu0 %v167
    %193 = vmatpush.msra.mxu0 %v166
    %194 = vmatpush.msra.mxu0 %v165
    %195 = vmatpush.msra.mxu0 %v164
    %196 = vmatpush.msra.mxu0 %v163
    %197 = vmatpush.msra.mxu0 %v162
    %198 = vmatmul.f32.gmra.mxu0 %v161
    %v199 = vpop.f32.mrf.mxu0
    %v200 = vadd.f32 %v180, %v199
    %201 = vdwg.mxu0
    %202 = vst [vmem:[#allocation10] sm:$0xff] %v200
    // Predicated region
    $region46: #{tpu_custom_call.1} parent=1 // pred_check
      _
    $region47: #{tpu_custom_call.1} parent=1 // pred_check_branch
      %204 = sbr.rel (0) target = $region49
    $region48: #{tpu_custom_call.1} parent=1 // pred_region
      %206 = vsyncadd [#allocation4], 0
      %s208 = sshll.u32 [#allocation10], 4
      %s209 = int_to_ptr.vmem [resolvable:$true] %s208
      %s210 = sshll.u32 %s7, 4
      %s211 = int_to_ptr.hbm [resolvable:$true] %s210
      %213 = dma.vmem_to_hbm [thread:$0]  %s209, 128, %s211, [#allocation4]
    $region49: #{tpu_custom_call.1} parent=1 // pred_fallthru
      _
    // Predicated region
    $region50: #{tpu_custom_call.1} parent=1 // pred_check
      _
    $region51: #{tpu_custom_call.1} parent=1 // pred_check_branch
      %215 = sbr.rel (0) target = $region53
    $region52: #{tpu_custom_call.1} parent=1 // pred_region
      %217 = dma.done [#allocation4], 128
    $region53: #{tpu_custom_call.1} parent=1 // pred_fallthru
      _
    %218 = vsyncpa [#allocation3], 1
    %219 = vsyncpa [#allocation6], 1
    %220 = vsyncpa [#allocation9], 1
    %221 = vsyncpa [#allocation4], 1

</llo_original>
